<compile_context>
chip_gen: v7x
topology: tpu7x:2x2x1
jax: 0.10.0
libtpu: 0.0.40
codegen_flags: <defaults>
</compile_context>

<pallas_src>
import functools

import jax
import jax.numpy as jnp
from jax.experimental import pallas as pl
from jax.experimental.pallas import tpu as pltpu

EXPANSION = 4                      # Bottleneck expansion
_VMEM_LIMIT = 32 * 1024 * 1024     # safe on v5e (128M), v6e (128M), v7x (64M)


def _round_up(x, m):
    return ((x + m - 1) // m) * m


def _pick_tk(kp, max_tk=512):
    """Largest multiple-of-128 divisor of kp that is <= max_tk."""
    q = kp // 128
    best = 1
    for d in range(1, max_tk // 128 + 1):
        if q % d == 0:
            best = d
    return best * 128


# ----------------------------------------------------------------------------
# Pallas kernels
# ----------------------------------------------------------------------------
def _mm_kernel(a_ref, b_ref, c_ref, o_ref, acc_ref, *, relu):
    """out = maybe_relu(A @ B + bias); K-reduction over grid axis 1."""
    k = pl.program_id(1)

    @pl.when(k == 0)
    def _():
        acc_ref[...] = jnp.zeros_like(acc_ref)

    acc_ref[...] += jnp.dot(a_ref[...], b_ref[...],
                            preferred_element_type=jnp.float32)

    @pl.when(k == pl.num_programs(1) - 1)
    def _():
        out = acc_ref[...] + c_ref[...]
        if relu:
            out = jnp.maximum(out, 0.0)
        o_ref[...] = out.astype(o_ref.dtype)


def _mm_res_kernel(a_ref, b_ref, c_ref, r_ref, o_ref, acc_ref, *, relu):
    """Same as _mm_kernel but with a fused residual add before the ReLU."""
    k = pl.program_id(1)

    @pl.when(k == 0)
    def _():
        acc_ref[...] = jnp.zeros_like(acc_ref)

    acc_ref[...] += jnp.dot(a_ref[...], b_ref[...],
                            preferred_element_type=jnp.float32)

    @pl.when(k == pl.num_programs(1) - 1)
    def _():
        out = acc_ref[...] + c_ref[...] + r_ref[...].astype(jnp.float32)
        if relu:
            out = jnp.maximum(out, 0.0)
        o_ref[...] = out.astype(o_ref.dtype)


def _maxpool_kernel(x_ref, o_ref):
    # x_ref: (9, TM, Cp) stacked window taps; reduce over the leading axis.
    o_ref[...] = jnp.max(x_ref[...], axis=0)


# ----------------------------------------------------------------------------
# Pallas wrappers
# ----------------------------------------------------------------------------
def matmul_bias(a, b, bias, *, relu=False, residual=None,
                out_dtype=jnp.bfloat16):
    """maybe_relu(a @ b + bias [+ residual]) via a tiled Pallas MXU matmul.

    a: (M, K) activations, b: (K, N) bf16 weights (BN scale pre-folded),
    bias: (1, N) f32, residual: (M, N) or None.
    Grid = (M tiles, K tiles); the full padded N stays resident per tile so
    the big activation operand is read from HBM exactly once.
    """
    M, K = a.shape
    K2, N = b.shape
    assert K == K2

    tm = min(256, _round_up(M, 8))
    Mp = _round_up(M, tm)
    Kp = _round_up(K, 128)
    tk = _pick_tk(Kp)
    Np = _round_up(N, 128)

    a_bf = a.astype(jnp.bfloat16)
    if (Mp, Kp) != (M, K):
        a_bf = jnp.zeros((Mp, Kp), jnp.bfloat16).at[:M, :K].set(a_bf)
    b_bf = b.astype(jnp.bfloat16)
    if (Kp, Np) != (K, N):
        b_bf = jnp.zeros((Kp, Np), jnp.bfloat16).at[:K, :N].set(b_bf)
    c_p = bias.astype(jnp.float32)
    if Np != N:
        c_p = jnp.zeros((1, Np), jnp.float32).at[:, :N].set(c_p)

    in_specs = [
        pl.BlockSpec((tm, tk), lambda i, k: (i, k)),   # A: streamed once
        pl.BlockSpec((tk, Np), lambda i, k: (k, 0)),   # B: re-streamed per M tile
        pl.BlockSpec((1, Np), lambda i, k: (0, 0)),    # bias
    ]
    args = [a_bf, b_bf, c_p]

    if residual is not None:
        r_bf = residual.astype(jnp.bfloat16)
        if (Mp, Np) != residual.shape:
            r_bf = jnp.zeros((Mp, Np), jnp.bfloat16).at[:M, :N].set(r_bf)
        in_specs.append(pl.BlockSpec((tm, Np), lambda i, k: (i, 0)))
        args.append(r_bf)
        kernel = functools.partial(_mm_res_kernel, relu=relu)
    else:
        kernel = functools.partial(_mm_kernel, relu=relu)

    out = pl.pallas_call(
        kernel,
        out_shape=jax.ShapeDtypeStruct((Mp, Np), out_dtype),
        grid_spec=pltpu.PrefetchScalarGridSpec(
            num_scalar_prefetch=0,
            grid=(Mp // tm, Kp // tk),
            in_specs=in_specs,
            out_specs=pl.BlockSpec((tm, Np), lambda i, k: (i, 0)),
            scratch_shapes=[pltpu.VMEM((tm, Np), jnp.float32)],
        ),
        compiler_params=pltpu.CompilerParams(
            dimension_semantics=("parallel", "arbitrary"),
            vmem_limit_bytes=_VMEM_LIMIT,
        ),
    )(*args)
    if (Mp, Np) != (M, N):
        out = out[:M, :N]
    return out


def _window_taps(x, kh, kw, stride, pad, pad_value=0.0):
    """x: NHWC -> list of kh*kw shifted views, each (N, OH, OW, C)."""
    N, H, W, C = x.shape
    if pad > 0:
        x = jnp.pad(x, ((0, 0), (pad, pad), (pad, pad), (0, 0)),
                    constant_values=pad_value)
    OH = (H + 2 * pad - kh) // stride + 1
    OW = (W + 2 * pad - kw) // stride + 1
    cols = [x[:, i:i + stride * OH:stride, j:j + stride * OW:stride, :]
            for i in range(kh) for j in range(kw)]
    return cols, (N, OH, OW)


def conv_bn(x, p, *, kh, kw, stride, pad, relu, residual=None):
    """conv2d (BN scale folded into weights) + bias (+ residual) (+ ReLU), NHWC."""
    cout = p['w'].shape[1]
    if kh == 1 and kw == 1:
        # 1x1 conv: no im2col, just a (strided) reshape of the activation.
        if stride != 1:
            x = x[:, ::stride, ::stride, :]
        n, oh, ow, _ = x.shape
        patches = x.reshape(n * oh * ow, x.shape[-1])
    else:
        # TODO(synk): 3x3/7x7 taps are still gathered host-side (im2col); an
        # in-kernel tap accumulation would cut this layer's HBM traffic further.
        cols, (n, oh, ow) = _window_taps(x, kh, kw, stride, pad)
        patches = jnp.stack(cols, axis=3).reshape(
            n * oh * ow, kh * kw * x.shape[-1])
    res = residual.reshape(n * oh * ow, cout) if residual is not None else None
    out = matmul_bias(patches, p['w'], p['b'], relu=relu, residual=res)
    return out.reshape(n, oh, ow, cout)


def maxpool_3x3_s2(x):
    """MaxPool2d(kernel_size=3, stride=2, padding=1).  x: NHWC bf16."""
    N, H, W, C = x.shape
    neg = float('-inf')
    cols, (n, oh, ow) = _window_taps(x, 3, 3, 2, 1, pad_value=neg)
    M = n * oh * ow
    taps = jnp.stack(cols, axis=0).reshape(9, M, C)

    tmm = min(512, _round_up(M, 8))
    Mp = _round_up(M, tmm)
    Cp = _round_up(C, 128)
    if (Mp, Cp) != (M, C):
        taps = jnp.full((9, Mp, Cp), neg, x.dtype).at[:, :M, :C].set(taps)

    out = pl.pallas_call(
        _maxpool_kernel,
        out_shape=jax.ShapeDtypeStruct((Mp, Cp), x.dtype),
        grid_spec=pltpu.PrefetchScalarGridSpec(
            num_scalar_prefetch=0,
            grid=(Mp // tmm,),
            in_specs=[pl.BlockSpec((9, tmm, Cp), lambda i: (0, i, 0))],
            out_specs=pl.BlockSpec((tmm, Cp), lambda i: (i, 0)),
        ),
        compiler_params=pltpu.CompilerParams(
            dimension_semantics=("parallel",),
            vmem_limit_bytes=_VMEM_LIMIT,
        ),
    )(taps)
    return out[:M, :C].reshape(n, oh, ow, C)


# ----------------------------------------------------------------------------
# Parameter initialization (mirrors _initialize_weights; BN folded at init)
# ----------------------------------------------------------------------------
def _folded_conv(key, kh, kw, cin, cout, eps=1e-5):
    # kaiming_normal_(mode='fan_out', nonlinearity='relu'): std = sqrt(2/fan_out)
    fan_out = cout * kh * kw
    std = (2.0 / fan_out) ** 0.5
    w = jax.random.normal(key, (kh, kw, cin, cout), jnp.float32) * std
    # Inference-mode BN: gamma=1, beta=0, mean=0, var=1; fold scale into weights.
    gamma = jnp.ones((cout,), jnp.float32)
    beta = jnp.zeros((cout,), jnp.float32)
    running_mean = jnp.zeros((cout,), jnp.float32)
    running_var = jnp.ones((cout,), jnp.float32)
    scale = gamma / jnp.sqrt(running_var + eps)
    bias = beta - running_mean * scale
    wmat = (w * scale).reshape(kh * kw * cin, cout).astype(jnp.bfloat16)
    return {'w': wmat, 'b': bias.reshape(1, cout)}


def init_bottleneck(key, cin, cmid, stride):
    keys = jax.random.split(key, 4)
    p = {
        'stride': stride,
        'c1': _folded_conv(keys[0], 1, 1, cin, cmid),
        'c2': _folded_conv(keys[1], 3, 3, cmid, cmid),
        'c3': _folded_conv(keys[2], 1, 1, cmid, cmid * EXPANSION),
    }
    if stride != 1 or cin != cmid * EXPANSION:
        p['cd'] = _folded_conv(keys[3], 1, 1, cin, cmid * EXPANSION)
    return p


def init_resnet(key, layers, num_classes=1000):
    keys = jax.random.split(key, 3)
    params = {'conv1': _folded_conv(keys[0], 7, 7, 3, 64)}
    widths = [64, 128, 256, 512]
    strides = [1, 2, 2, 2]
    in_ch = 64
    stages = []
    stage_keys = jax.random.split(keys[1], 4)
    for si in range(4):
        blocks = []
        bkeys = jax.random.split(stage_keys[si], layers[si])
        for bi in range(layers[si]):
            stride = strides[si] if bi == 0 else 1
            blocks.append(init_bottleneck(bkeys[bi], in_ch, widths[si], stride))
            in_ch = widths[si] * EXPANSION
        stages.append(blocks)
    params['stages'] = stages
    params['fc_w'] = (jax.random.normal(
        keys[2], (512 * EXPANSION, num_classes), jnp.float32) * 0.01
        ).astype(jnp.bfloat16)
    params['fc_b'] = jnp.zeros((1, num_classes), jnp.float32)
    return params


# ----------------------------------------------------------------------------
# Forward pass
# ----------------------------------------------------------------------------
def bottleneck_forward(x, p):
    stride = p['stride']
    out = conv_bn(x, p['c1'], kh=1, kw=1, stride=1, pad=0, relu=True)
    out = conv_bn(out, p['c2'], kh=3, kw=3, stride=stride, pad=1, relu=True)
    if 'cd' in p:
        identity = conv_bn(x, p['cd'], kh=1, kw=1, stride=stride, pad=0,
                           relu=False)
    else:
        identity = x
    # conv3 + bn3 + residual add + ReLU fused into a single Pallas matmul epilogue
    out = conv_bn(out, p['c3'], kh=1, kw=1, stride=1, pad=0, relu=True,
                  residual=identity)
    return out


def resnet_forward(params, x_nchw):
    x = jnp.transpose(x_nchw, (0, 2, 3, 1)).astype(jnp.bfloat16)  # NCHW -> NHWC
    x = conv_bn(x, params['conv1'], kh=7, kw=7, stride=2, pad=3, relu=True)
    x = maxpool_3x3_s2(x)
    for stage in params['stages']:
        for bp in stage:
            x = bottleneck_forward(x, bp)
    # AdaptiveAvgPool2d((1,1)) + flatten: mean over H,W (tiny reduction, JAX glue)
    x = jnp.mean(x.astype(jnp.float32), axis=(1, 2))  # (N, 2048)
    return matmul_bias(x, params['fc_w'], params['fc_b'],
                       relu=False, out_dtype=jnp.float32)


if __name__ == "__main__":
    key = jax.random.PRNGKey(0)
    k_param, k_x = jax.random.split(key)

    # Small configuration: Bottleneck block, one block per stage.
    layers = [1, 1, 1, 1]
    num_classes = 1000
    params = init_resnet(k_param, layers, num_classes=num_classes)

    # PyTorch-style NCHW input.
    x = jax.random.normal(k_x, (2, 3, 32, 32), jnp.float32)

    out = resnet_forward(params, x)
    out = jax.block_until_ready(out)
    assert out.shape == (2, num_classes)
    assert bool(jnp.all(jnp.isfinite(out)))
    print("KERNEL_OK")
</pallas_src>

<mosaic_0001>
module attributes {stable_mosaic.version = 11 : i64} {
  func.func @_mm_kernel(%arg0: i32, %arg1: i32, %arg2: memref<256x256xbf16, #tpu.memory_space<vmem>>, %arg3: memref<256x128xbf16, #tpu.memory_space<vmem>>, %arg4: memref<1x128xf32, #tpu.memory_space<vmem>>, %arg5: memref<256x128xbf16, #tpu.memory_space<vmem>>, %arg6: memref<256x128xf32, #tpu.memory_space<vmem>>) attributes {dimension_semantics = [#tpu.dimension_semantics<parallel>, #tpu.dimension_semantics<arbitrary>], iteration_bounds = array<i64: 2, 1>, scalar_prefetch = 0 : i64, scratch_operands = 1 : i64, tpu.core_type = #tpu.core_type<tc>, window_params = [{transform_indices = @transform_0, window_bounds = array<i64: 256, 256>}, {transform_indices = @transform_1, window_bounds = array<i64: 256, 128>}, {pipeline_mode = #tpu.pipeline_mode<synchronous>, transform_indices = @transform_2, window_bounds = array<i64: 1, 128>}, {transform_indices = @transform_3, window_bounds = array<i64: 256, 128>}]} {
    %c0_i32 = arith.constant 0 : i32
    %0 = arith.cmpi eq, %arg1, %c0_i32 : i32
    %1 = arith.extui %0 : i1 to i32
    %c0_i32_0 = arith.constant 0 : i32
    %2 = arith.cmpi ne, %1, %c0_i32_0 : i32
    scf.if %2 {
      %cst_10 = arith.constant 0.000000e+00 : f32
      %12 = vector.broadcast %cst_10 : f32 to vector<256x128xf32>
      %c0_11 = arith.constant 0 : index
      %c0_12 = arith.constant 0 : index
      %13 = vector.load %arg6[%c0_11, %c0_12] : memref<256x128xf32, #tpu.memory_space<vmem>>, vector<256x128xf32>
      tpu.vector_store %arg6[%c0_11, %c0_12], %12 {strides = array<i32>} : memref<256x128xf32, #tpu.memory_space<vmem>>, vector<256x128xf32>,
    } else {
    }
    %c0 = arith.constant 0 : index
    %c0_1 = arith.constant 0 : index
    %3 = vector.load %arg6[%c0, %c0_1] : memref<256x128xf32, #tpu.memory_space<vmem>>, vector<256x128xf32>
    %c0_2 = arith.constant 0 : index
    %c0_3 = arith.constant 0 : index
    %4 = vector.load %arg2[%c0_2, %c0_3] : memref<256x256xbf16, #tpu.memory_space<vmem>>, vector<256x256xbf16>
    %c0_4 = arith.constant 0 : index
    %c0_5 = arith.constant 0 : index
    %5 = vector.load %arg3[%c0_4, %c0_5] : memref<256x128xbf16, #tpu.memory_space<vmem>>, vector<256x128xbf16>
    %cst = arith.constant dense<0.000000e+00> : vector<256x128xf32>
    %6 = tpu.matmul %4, %5, %cst {dimension_numbers = #tpu.dot_dimension_numbers<[1], [0], [0], [1], [0, 0, 1, 1], [], []>} : vector<256x256xbf16>, vector<256x128xbf16>, vector<256x128xf32> -> vector<256x128xf32>
    %7 = arith.addf %3, %6 : vector<256x128xf32>
    %c0_6 = arith.constant 0 : index
    %c0_7 = arith.constant 0 : index
    %8 = vector.load %arg6[%c0_6, %c0_7] : memref<256x128xf32, #tpu.memory_space<vmem>>, vector<256x128xf32>
    tpu.vector_store %arg6[%c0_6, %c0_7], %7 {strides = array<i32>} : memref<256x128xf32, #tpu.memory_space<vmem>>, vector<256x128xf32>,
    %c0_i32_8 = arith.constant 0 : i32
    %9 = arith.cmpi eq, %arg1, %c0_i32_8 : i32
    %10 = arith.extui %9 : i1 to i32
    %c0_i32_9 = arith.constant 0 : i32
    %11 = arith.cmpi ne, %10, %c0_i32_9 : i32
    scf.if %11 {
      %c0_10 = arith.constant 0 : index
      %c0_11 = arith.constant 0 : index
      %12 = vector.load %arg6[%c0_10, %c0_11] : memref<256x128xf32, #tpu.memory_space<vmem>>, vector<256x128xf32>
      %c0_12 = arith.constant 0 : index
      %c0_13 = arith.constant 0 : index
      %13 = vector.load %arg4[%c0_12, %c0_13] : memref<1x128xf32, #tpu.memory_space<vmem>>, vector<1x128xf32>
      %14 = vector.broadcast %13 : vector<1x128xf32> to vector<256x128xf32>
      %15 = arith.addf %12, %14 : vector<256x128xf32>
      %cst_14 = arith.constant 0.000000e+00 : f32
      %16 = vector.broadcast %cst_14 : f32 to vector<256x128xf32>
      %17 = arith.maximumf %15, %16 : vector<256x128xf32>
      %18 = arith.truncf %17 : vector<256x128xf32> to vector<256x128xbf16>
      %c0_15 = arith.constant 0 : index
      %c0_16 = arith.constant 0 : index
      %19 = vector.load %arg5[%c0_15, %c0_16] : memref<256x128xbf16, #tpu.memory_space<vmem>>, vector<256x128xbf16>
      tpu.vector_store %arg5[%c0_15, %c0_16], %18 {strides = array<i32>} : memref<256x128xbf16, #tpu.memory_space<vmem>>, vector<256x128xbf16>,
    } else {
    }
    return
  }
  func.func @transform_0(%arg0: i32, %arg1: i32) -> (i32, i32) {
    %c0_i32 = arith.constant 0 : i32
    return %arg0, %arg1 : i32, i32
  }
  func.func @transform_1(%arg0: i32, %arg1: i32) -> (i32, i32) {
    %c0_i32 = arith.constant 0 : i32
    %c0_i32_0 = arith.constant 0 : i32
    return %arg1, %c0_i32 : i32, i32
  }
  func.func @transform_2(%arg0: i32, %arg1: i32) -> (i32, i32) {
    %c0_i32 = arith.constant 0 : i32
    %c0_i32_0 = arith.constant 0 : i32
    %c0_i32_1 = arith.constant 0 : i32
    return %c0_i32, %c0_i32_0 : i32, i32
  }
  func.func @transform_3(%arg0: i32, %arg1: i32) -> (i32, i32) {
    %c0_i32 = arith.constant 0 : i32
    %c0_i32_0 = arith.constant 0 : i32
    return %arg0, %c0_i32 : i32, i32
  }
}

</mosaic_0001>

<llo_original>
// kernel: tpu_custom_call.1
$region0: #{tpu_custom_call.1}
  #allocation0 [shape = 'u32[]', space=smem, size = 0x4, offset = 0x4, fixed_abs, tag = 'smem constant byte address 0x4 - core index']
  #allocation1 [shape = 'u32[144,128]{1,0:T(1,128)}', space=vmem, size = 0x12000, scoped, tag = 'internal scratch']
  #allocation2 [shape = 'f32[256,128]{1,0:T(8,128)}', space=vmem, size = 0x20000, scoped, tag = 'scratch operand']
  %s0 = inlined_call_operand.hbm [shape: bf16[512,256], index: 0, kind: input, shape index: {}]
  %s1 = inlined_call_operand.hbm [shape: bf16[256,128], index: 1, kind: input, shape index: {}]
  %s2 = inlined_call_operand.vmem [shape: f32[1,128], index: 2, kind: input, shape index: {}]
  %s3 = inlined_call_operand.hbm [shape: bf16[512,128], index: 3, kind: output, shape index: {}]
  %s4 = sld [smem:[#allocation0]]
  $region61: #{tpu_custom_call.1} parent=0
    _
  %s6 = ssub.s32 1, %s4
  %s7 = scalar_select 0, %s6, %s4
  $region1: #{tpu_custom_call.1} parent=0
    #allocation3 [shape = 'u8[262144]{0}', space=vmem, size = 0x40000, scoped, tag = 'input window, operand 0']
    #allocation4 [shape = 's32[2]{0}', space=sflag, size = 0x8, scoped, tag = 'scoped memory for tpu_custom_call.1']
    #allocation5 [shape = 's32[2]{0}', space=sflag, size = 0x8, scoped, tag = 'scoped memory for tpu_custom_call.1']
    #allocation6 [shape = 'u8[65536]{0}', space=vmem, size = 0x10000, scoped, tag = 'input window, operand 1, single buffered']
    #allocation7 [shape = 's32[1]{0}', space=sflag, size = 0x4, scoped, tag = 'scoped memory for tpu_custom_call.1']
    #allocation8 [shape = 'u8[131072]{0}', space=vmem, size = 0x20000, scoped, tag = 'output window, operand 0']
    %8 = vsyncpa [#allocation4], 0
    %s9 = scalar_lea.sflag [#allocation4], 1
    %10 = vsyncpa %s9, 0
    %11 = vsyncpa [#allocation7], 0
    %12 = vsyncpa [#allocation5], 0
    %s13 = scalar_lea.sflag [#allocation5], 1
    %14 = vsyncpa %s13, 0
    loop: start=0, step=1, limit=4
    $region2: #{tpu_custom_call.1} parent=1 // loop_pre_header
      _
    $region3: #{tpu_custom_call.1} parent=1 // loop_header
      %s16 = sphi 0, %s20
      %p17 = scmp.ge.s32.totalorder %s16, 4
      %s23 = sphi 0, %s35
      %s24 = sphi 0, %s31
      %s25 = sphi 0, %s23
      %s26 = sphi 0, %s24
      %s27 = sphi 0, %s25
      %s28 = sphi 0, %s26
      %s40 = sphi 0, %s42
      %s43 = sphi 0, %s40
      %s44 = sphi 0, %s43
      %s60 = sphi 0, %s44
      %s66 = sphi 0, %s68
      %s69 = sphi 0, %s66
      %s70 = sphi 0, %s69
      %s86 = sphi 0, %s70
      %s90 = sphi 0, %s90
      %s92 = sphi 0, %s90
      %s93 = sphi 0, %s92
      %s107 = sphi 0, %s93
      %s113 = sphi 0, %s115
      %s116 = sphi 0, %s113
      %s117 = sphi 0, %s116
      %s133 = sphi 0, %s117
    $region4: #{tpu_custom_call.1} parent=1 // loop_header_branch
      %19 = sbr.rel (%p17) target = $region8
    $region5: #{tpu_custom_call.1} parent=1 // loop_body
      %s21 = ssub.s32 %s16, 1
      %s22 = ssub.s32 %s16, 2
      %s29 = sadd.s32 1, %s24
      %p30 = scmp.ge.s32.totalorder %s29, 1
      %s31 = scalar_select %p30, 0, %s29
      %s32 = sadd.s32 1, %s23
      %s33 = scalar_select %p30, %s32, %s23
      %p34 = scmp.ge.s32.totalorder %s33, 2
      %s35 = scalar_select %p34, 0, %s33
      %s36 = ssub.s32 %s23, %s35
      %s37 = ssub.s32 %s24, %s31
      %s38 = sor.u32 %s36, %s37
      %p39 = scmp.eq.s32.totalorder %s38, 0
      %s41 = sadd.s32 %s40, 1
      %s42 = scalar_select %p39, %s40, %s41
      %p45 = pneg %p39
      %p46 = scmp.eq.s32.totalorder %s16, 1
      %p47 = por %p45, %p46
      %p48 = scmp.ne.s32.totalorder %s40, %s43
      %p49 = scmp.eq.s32.totalorder %s16, 0
      %p50 = por %p48, %p49
      %p51 = scmp.ne.s32.totalorder %s40, %s43
      %p52 = scmp.eq.s32.totalorder %s21, 1
      %p53 = por %p51, %p52
      %p54 = scmp.ne.s32.totalorder %s43, %s44
      %p55 = scmp.eq.s32.totalorder %s21, 0
      %p56 = por %p54, %p55
      %p57 = scmp.ne.s32.totalorder %s43, %s44
      %p58 = scmp.eq.s32.totalorder %s22, 1
      %p59 = por %p57, %p58
      %p61 = scmp.ne.s32.totalorder %s44, %s60
      %p62 = scmp.eq.s32.totalorder %s22, 0
      %p63 = por %p61, %p62
      %s64 = ssub.s32 %s24, %s31
      %p65 = scmp.eq.s32.totalorder %s64, 0
      %s67 = sadd.s32 %s66, 1
      %s68 = scalar_select %p65, %s66, %s67
      %p71 = pneg %p65
      %p72 = scmp.eq.s32.totalorder %s16, 1
      %p73 = por %p71, %p72
      %p74 = scmp.ne.s32.totalorder %s66, %s69
      %p75 = scmp.eq.s32.totalorder %s16, 0
      %p76 = por %p74, %p75
      %p77 = scmp.ne.s32.totalorder %s66, %s69
      %p78 = scmp.eq.s32.totalorder %s21, 1
      %p79 = por %p77, %p78
      %p80 = scmp.ne.s32.totalorder %s69, %s70
      %p81 = scmp.eq.s32.totalorder %s21, 0
      %p82 = por %p80, %p81
      %p83 = scmp.ne.s32.totalorder %s69, %s70
      %p84 = scmp.eq.s32.totalorder %s22, 1
      %p85 = por %p83, %p84
      %p87 = scmp.ne.s32.totalorder %s70, %s86
      %p88 = scmp.eq.s32.totalorder %s22, 0
      %p89 = por %p87, %p88
      %s91 = sadd.s32 %s90, 1
      %p94 = scmp.eq.s32.totalorder %s16, 1
      %p95 = scmp.ne.s32.totalorder %s90, %s92
      %p96 = scmp.eq.s32.totalorder %s16, 0
      %p97 = por %p95, %p96
      %p98 = scmp.ne.s32.totalorder %s90, %s92
      %p99 = scmp.eq.s32.totalorder %s21, 1
      %p100 = por %p98, %p99
      %p101 = scmp.ne.s32.totalorder %s92, %s93
      %p102 = scmp.eq.s32.totalorder %s21, 0
      %p103 = por %p101, %p102
      %p104 = scmp.ne.s32.totalorder %s92, %s93
      %p105 = scmp.eq.s32.totalorder %s22, 1
      %p106 = por %p104, %p105
      %p108 = scmp.ne.s32.totalorder %s93, %s107
      %p109 = scmp.eq.s32.totalorder %s22, 0
      %p110 = por %p108, %p109
      %s111 = ssub.s32 %s23, %s35
      %p112 = scmp.eq.s32.totalorder %s111, 0
      %s114 = sadd.s32 %s113, 1
      %s115 = scalar_select %p112, %s113, %s114
      %p118 = pneg %p112
      %p119 = scmp.eq.s32.totalorder %s16, 1
      %p120 = por %p118, %p119
      %p121 = scmp.ne.s32.totalorder %s113, %s116
      %p122 = scmp.eq.s32.totalorder %s16, 0
      %p123 = por %p121, %p122
      %p124 = scmp.ne.s32.totalorder %s113, %s116
      %p125 = scmp.eq.s32.totalorder %s21, 1
      %p126 = por %p124, %p125
      %p127 = scmp.ne.s32.totalorder %s116, %s117
      %p128 = scmp.eq.s32.totalorder %s21, 0
      %p129 = por %p127, %p128
      %p130 = scmp.ne.s32.totalorder %s116, %s117
      %p131 = scmp.eq.s32.totalorder %s22, 1
      %p132 = por %p130, %p131
      %p134 = scmp.ne.s32.totalorder %s117, %s133
      %p135 = scmp.eq.s32.totalorder %s22, 0
      %p136 = por %p134, %p135
      %p137 = scmp.le.s32.totalorder 1, %s16
      %p138 = scmp.lt.s32.totalorder %s16, 3
      %p139 = pnand %p137, %p138
      %p140 = pneg %p139
      // Predicated region
      $region9: #{tpu_custom_call.1} parent=5 // pred_check
        _
      $region10: #{tpu_custom_call.1} parent=5 // pred_check_branch
        %142 = sbr.rel (%p139) target = $region12
      $region11: #{tpu_custom_call.1} parent=5 // pred_region
        %s143 = ssub.s32 %s16, 1
        // Predicated region
        $region13: #{tpu_custom_call.1} parent=11 // pred_check
          %p144 = pneg %p82
        $region14: #{tpu_custom_call.1} parent=11 // pred_check_branch
          %146 = sbr.rel (%p144) target = $region16
        $region15: #{tpu_custom_call.1} parent=11 // pred_region
          %s147 = smul.u32 32, %s26
          %s149 = ssub.s32 2048, 2048
          %150 = vsyncadd [#allocation7], %s149
          %s151 = smul.addr %s147, 64
          %s152 = scalar_lea.hbm %s1, %s151
          %s153 = sshll.u32 [#allocation6], 4
          %s154 = int_to_ptr.vmem [resolvable:$true] %s153
          %159 = dma.hbm_to_vmem [thread:$0]  %s152, 2048, %s154, [#allocation7], 64, 64, 4
        $region16: #{tpu_custom_call.1} parent=11 // pred_fallthru
          _
        // Predicated region
        $region17: #{tpu_custom_call.1} parent=11 // pred_check
          %p160 = pneg %p103
        $region18: #{tpu_custom_call.1} parent=11 // pred_check_branch
          %162 = sbr.rel (%p160) target = $region20
        $region19: #{tpu_custom_call.1} parent=11 // pred_region
          _
        $region20: #{tpu_custom_call.1} parent=11 // pred_fallthru
          _
      $region12: #{tpu_custom_call.1} parent=5 // pred_fallthru
        _
      %p163 = scmp.lt.s32.totalorder %s16, 2
      // Predicated region
      $region21: #{tpu_custom_call.1} parent=5 // pred_check
        %p164 = pneg %p163
      $region22: #{tpu_custom_call.1} parent=5 // pred_check_branch
        %166 = sbr.rel (%p164) target = $region24
      $region23: #{tpu_custom_call.1} parent=5 // pred_region
        // Predicated region
        $region25: #{tpu_custom_call.1} parent=23 // pred_check
          %p167 = pneg %p50
        $region26: #{tpu_custom_call.1} parent=23 // pred_check_branch
          %169 = sbr.rel (%p167) target = $region28
        $region27: #{tpu_custom_call.1} parent=23 // pred_region
          %s170 = sand.u32 %s40, 1
          %s171 = scalar_lea.sflag [#allocation4], %s170
          %s172 = sand.u32 %s40, 1
          %s173 = smul.addr %s172, 256
          %s174 = scalar_lea.vmem [#allocation3], %s173
          %s175 = smul.u32 32, %s23
          %s176 = smul.u32 2, %s24
          %s178 = ssub.s32 4096, 4096
          %179 = vsyncadd %s171, %s178
          %s180 = smul.addr %s175, 2
          %s181 = sadd.s32 %s176, %s180
          %s182 = smul.addr %s181, 64
          %s183 = scalar_lea.hbm %s0, %s182
          %s184 = sshll.u32 %s174, 4
          %s185 = int_to_ptr.vmem [resolvable:$true] %s184
          %190 = dma.hbm_to_vmem [thread:$0]  %s183, 4096, %s185, %s171, 128, 128, 8
        $region28: #{tpu_custom_call.1} parent=23 // pred_fallthru
          _
      $region24: #{tpu_custom_call.1} parent=5 // pred_fallthru
        _
      %p191 = scmp.le.s32.totalorder 1, %s16
      %p192 = scmp.lt.s32.totalorder %s16, 3
      %p193 = pnand %p191, %p192
      %p194 = pneg %p193
      // Predicated region
      $region29: #{tpu_custom_call.1} parent=5 // pred_check
        _
      $region30: #{tpu_custom_call.1} parent=5 // pred_check_branch
        %196 = sbr.rel (%p193) target = $region32
      $region31: #{tpu_custom_call.1} parent=5 // pred_region
        %s197 = ssub.s32 %s16, 1
        %s198 = sand.u32 %s43, 1
        %s199 = scalar_lea.sflag [#allocation4], %s198
        %s200 = sand.u32 %s43, 1
        %s201 = smul.addr %s200, 256
        %s202 = scalar_lea.vmem [#allocation3], %s201
        // Predicated region
        $region33: #{tpu_custom_call.1} parent=31 // pred_check
          %p203 = pneg %p56
        $region34: #{tpu_custom_call.1} parent=31 // pred_check_branch
          %205 = sbr.rel (%p203) target = $region36
        $region35: #{tpu_custom_call.1} parent=31 // pred_region
          %206 = dma.done %s199, 4096
        $region36: #{tpu_custom_call.1} parent=31 // pred_fallthru
          _
        // Predicated region
        $region37: #{tpu_custom_call.1} parent=31 // pred_check
          %p207 = pneg %p82
        $region38: #{tpu_custom_call.1} parent=31 // pred_check_branch
          %209 = sbr.rel (%p207) target = $region40
        $region39: #{tpu_custom_call.1} parent=31 // pred_region
          %210 = dma.done [#allocation7], 2048
        $region40: #{tpu_custom_call.1} parent=31 // pred_fallthru
          _
        %s211 = sand.u32 %s43, 1
        %s212 = scalar_lea.sflag [#allocation4], %s211
        %s213 = sand.u32 %s43, 1
        %s214 = smul.addr %s213, 256
        %s215 = scalar_lea.vmem [#allocation3], %s214
        %p216 = pneg %p56
        %p217 = pneg %p53
        %p218 = pneg %p82
        %p219 = pneg %p79
        %p220 = pneg %p103
        %p221 = pneg %p100
        %p222 = pneg %p129
        %p223 = pneg %p126
        %s224 = sand.u32 %s116, 1
        %s225 = scalar_lea.sflag [#allocation5], %s224
        %s226 = sand.u32 %s116, 1
        %s227 = smul.addr %s226, 128
        %s228 = scalar_lea.vmem [#allocation8], %s227
        %s229 = smul.u32 32, %s25
        %s230 = smul.u32 2, %s26
        %s231 = smul.u32 32, %s26
        %s232 = smul.u32 32, %s25
        %p234 = scmp.eq.s32.totalorder %s26, 0
        // Predicated region
        $region41: #{tpu_custom_call.1} parent=31 // pred_check
          %p235 = pneg %p234
        $region42: #{tpu_custom_call.1} parent=31 // pred_check_branch
          %237 = sbr.rel (%p235) target = $region44
        $region43: #{tpu_custom_call.1} parent=31 // pred_region
          %238 = vst [vmem:[#allocation2] sm:$0xff] 0.0
          %239 = vst [vmem:[#allocation2 + $0x8] sm:$0xff] 0.0
          %240 = vst [vmem:[#allocation2 + $0x10] sm:$0xff] 0.0
          %241 = vst [vmem:[#allocation2 + $0x18] sm:$0xff] 0.0
          %242 = vst [vmem:[#allocation2 + $0x20] sm:$0xff] 0.0
          %243 = vst [vmem:[#allocation2 + $0x28] sm:$0xff] 0.0
          %244 = vst [vmem:[#allocation2 + $0x30] sm:$0xff] 0.0
          %245 = vst [vmem:[#allocation2 + $0x38] sm:$0xff] 0.0
          %246 = vst [vmem:[#allocation2 + $0x40] sm:$0xff] 0.0
          %247 = vst [vmem:[#allocation2 + $0x48] sm:$0xff] 0.0
          %248 = vst [vmem:[#allocation2 + $0x50] sm:$0xff] 0.0
          %249 = vst [vmem:[#allocation2 + $0x58] sm:$0xff] 0.0
          %250 = vst [vmem:[#allocation2 + $0x60] sm:$0xff] 0.0
          %251 = vst [vmem:[#allocation2 + $0x68] sm:$0xff] 0.0
          %252 = vst [vmem:[#allocation2 + $0x70] sm:$0xff] 0.0
          %253 = vst [vmem:[#allocation2 + $0x78] sm:$0xff] 0.0
          %254 = vst [vmem:[#allocation2 + $0x80] sm:$0xff] 0.0
          %255 = vst [vmem:[#allocation2 + $0x88] sm:$0xff] 0.0
          %256 = vst [vmem:[#allocation2 + $0x90] sm:$0xff] 0.0
          %257 = vst [vmem:[#allocation2 + $0x98] sm:$0xff] 0.0
          %258 = vst [vmem:[#allocation2 + $0xa0] sm:$0xff] 0.0
          %259 = vst [vmem:[#allocation2 + $0xa8] sm:$0xff] 0.0
          %260 = vst [vmem:[#allocation2 + $0xb0] sm:$0xff] 0.0
          %261 = vst [vmem:[#allocation2 + $0xb8] sm:$0xff] 0.0
          %262 = vst [vmem:[#allocation2 + $0xc0] sm:$0xff] 0.0
          %263 = vst [vmem:[#allocation2 + $0xc8] sm:$0xff] 0.0
          %264 = vst [vmem:[#allocation2 + $0xd0] sm:$0xff] 0.0
          %265 = vst [vmem:[#allocation2 + $0xd8] sm:$0xff] 0.0
          %266 = vst [vmem:[#allocation2 + $0xe0] sm:$0xff] 0.0
          %267 = vst [vmem:[#allocation2 + $0xe8] sm:$0xff] 0.0
          %268 = vst [vmem:[#allocation2 + $0xf0] sm:$0xff] 0.0
          %269 = vst [vmem:[#allocation2 + $0xf8] sm:$0xff] 0.0
        $region44: #{tpu_custom_call.1} parent=31 // pred_fallthru
          _
        %v270 = vld [vmem:[#allocation2] sm:$0xff]
        %v271 = vld [vmem:[#allocation2 + $0x8] sm:$0xff]
        %v272 = vld [vmem:[#allocation2 + $0x10] sm:$0xff]
        %v273 = vld [vmem:[#allocation2 + $0x18] sm:$0xff]
        %v274 = vld [vmem:[#allocation2 + $0x20] sm:$0xff]
        %v275 = vld [vmem:[#allocation2 + $0x28] sm:$0xff]
        %v276 = vld [vmem:[#allocation2 + $0x30] sm:$0xff]
        %v277 = vld [vmem:[#allocation2 + $0x38] sm:$0xff]
        %v278 = vld [vmem:[#allocation2 + $0x40] sm:$0xff]
        %v279 = vld [vmem:[#allocation2 + $0x48] sm:$0xff]
        %v280 = vld [vmem:[#allocation2 + $0x50] sm:$0xff]
        %v281 = vld [vmem:[#allocation2 + $0x58] sm:$0xff]
        %v282 = vld [vmem:[#allocation2 + $0x60] sm:$0xff]
        %v283 = vld [vmem:[#allocation2 + $0x68] sm:$0xff]
        %v284 = vld [vmem:[#allocation2 + $0x70] sm:$0xff]
        %v285 = vld [vmem:[#allocation2 + $0x78] sm:$0xff]
        %v286 = vld [vmem:[#allocation2 + $0x80] sm:$0xff]
        %v287 = vld [vmem:[#allocation2 + $0x88] sm:$0xff]
        %v288 = vld [vmem:[#allocation2 + $0x90] sm:$0xff]
        %v289 = vld [vmem:[#allocation2 + $0x98] sm:$0xff]
        %v290 = vld [vmem:[#allocation2 + $0xa0] sm:$0xff]
        %v291 = vld [vmem:[#allocation2 + $0xa8] sm:$0xff]
        %v292 = vld [vmem:[#allocation2 + $0xb0] sm:$0xff]
        %v293 = vld [vmem:[#allocation2 + $0xb8] sm:$0xff]
        %v294 = vld [vmem:[#allocation2 + $0xc0] sm:$0xff]
        %v295 = vld [vmem:[#allocation2 + $0xc8] sm:$0xff]
        %v296 = vld [vmem:[#allocation2 + $0xd0] sm:$0xff]
        %v297 = vld [vmem:[#allocation2 + $0xd8] sm:$0xff]
        %v298 = vld [vmem:[#allocation2 + $0xe0] sm:$0xff]
        %v299 = vld [vmem:[#allocation2 + $0xe8] sm:$0xff]
        %v300 = vld [vmem:[#allocation2 + $0xf0] sm:$0xff]
        %v301 = vld [vmem:[#allocation2 + $0xf8] sm:$0xff]
        %v302 = vld [vmem:[%s202] sm:$0xff]
        %v303 = vld [vmem:[%s202 + $0x8] sm:$0xff]
        %v304 = vld [vmem:[%s202 + $0x10] sm:$0xff]
        %v305 = vld [vmem:[%s202 + $0x18] sm:$0xff]
        %v306 = vld [vmem:[%s202 + $0x20] sm:$0xff]
        %v307 = vld [vmem:[%s202 + $0x28] sm:$0xff]
        %v308 = vld [vmem:[%s202 + $0x30] sm:$0xff]
        %v309 = vld [vmem:[%s202 + $0x38] sm:$0xff]
        %v310 = vld [vmem:[%s202 + $0x40] sm:$0xff]
        %v311 = vld [vmem:[%s202 + $0x48] sm:$0xff]
        %v312 = vld [vmem:[%s202 + $0x50] sm:$0xff]
        %v313 = vld [vmem:[%s202 + $0x58] sm:$0xff]
        %v314 = vld [vmem:[%s202 + $0x60] sm:$0xff]
        %v315 = vld [vmem:[%s202 + $0x68] sm:$0xff]
        %v316 = vld [vmem:[%s202 + $0x70] sm:$0xff]
        %v317 = vld [vmem:[%s202 + $0x78] sm:$0xff]
        %v318 = vld [vmem:[%s202 + $0x80] sm:$0xff]
        %v319 = vld [vmem:[%s202 + $0x88] sm:$0xff]
        %v320 = vld [vmem:[%s202 + $0x90] sm:$0xff]
        %v321 = vld [vmem:[%s202 + $0x98] sm:$0xff]
        %v322 = vld [vmem:[%s202 + $0xa0] sm:$0xff]
        %v323 = vld [vmem:[%s202 + $0xa8] sm:$0xff]
        %v324 = vld [vmem:[%s202 + $0xb0] sm:$0xff]
        %v325 = vld [vmem:[%s202 + $0xb8] sm:$0xff]
        %v326 = vld [vmem:[%s202 + $0xc0] sm:$0xff]
        %v327 = vld [vmem:[%s202 + $0xc8] sm:$0xff]
        %v328 = vld [vmem:[%s202 + $0xd0] sm:$0xff]
        %v329 = vld [vmem:[%s202 + $0xd8] sm:$0xff]
        %v330 = vld [vmem:[%s202 + $0xe0] sm:$0xff]
        %v331 = vld [vmem:[%s202 + $0xe8] sm:$0xff]
        %v332 = vld [vmem:[%s202 + $0xf0] sm:$0xff]
        %v333 = vld [vmem:[%s202 + $0xf8] sm:$0xff]
        %v334 = vld [vmem:[#allocation6] sm:$0xf]
        %v335 = vld [vmem:[#allocation6 + $0x4] sm:$0xf]
        %v336 = vld [vmem:[#allocation6 + $0x8] sm:$0xf]
        %v337 = vld [vmem:[#allocation6 + $0xc] sm:$0xf]
        %v338 = vld [vmem:[#allocation6 + $0x10] sm:$0xf]
        %v339 = vld [vmem:[#allocation6 + $0x14] sm:$0xf]
        %v340 = vld [vmem:[#allocation6 + $0x18] sm:$0xf]
        %v341 = vld [vmem:[#allocation6 + $0x1c] sm:$0xf]
        %v342 = vld [vmem:[#allocation6 + $0x20] sm:$0xf]
        %v343 = vld [vmem:[#allocation6 + $0x24] sm:$0xf]
        %v344 = vld [vmem:[#allocation6 + $0x28] sm:$0xf]
        %v345 = vld [vmem:[#allocation6 + $0x2c] sm:$0xf]
        %v346 = vld [vmem:[#allocation6 + $0x30] sm:$0xf]
        %v347 = vld [vmem:[#allocation6 + $0x34] sm:$0xf]
        %v348 = vld [vmem:[#allocation6 + $0x38] sm:$0xf]
        %v349 = vld [vmem:[#allocation6 + $0x3c] sm:$0xf]
        %v350 = vld [vmem:[#allocation6 + $0x40] sm:$0xf]
        %v351 = vld [vmem:[#allocation6 + $0x44] sm:$0xf]
        %v352 = vld [vmem:[#allocation6 + $0x48] sm:$0xf]
        %v353 = vld [vmem:[#allocation6 + $0x4c] sm:$0xf]
        %v354 = vld [vmem:[#allocation6 + $0x50] sm:$0xf]
        %v355 = vld [vmem:[#allocation6 + $0x54] sm:$0xf]
        %v356 = vld [vmem:[#allocation6 + $0x58] sm:$0xf]
        %v357 = vld [vmem:[#allocation6 + $0x5c] sm:$0xf]
        %v358 = vld [vmem:[#allocation6 + $0x60] sm:$0xf]
        %v359 = vld [vmem:[#allocation6 + $0x64] sm:$0xf]
        %v360 = vld [vmem:[#allocation6 + $0x68] sm:$0xf]
        %v361 = vld [vmem:[#allocation6 + $0x6c] sm:$0xf]
        %v362 = vld [vmem:[#allocation6 + $0x70] sm:$0xf]
        %v363 = vld [vmem:[#allocation6 + $0x74] sm:$0xf]
        %v364 = vld [vmem:[#allocation6 + $0x78] sm:$0xf]
        %v365 = vld [vmem:[#allocation6 + $0x7c] sm:$0xf]
        %v398 = vunpack.c.l.b16 %v302
        %v399 = vunpack.c.h.b16 %v302
        %v400 = vunpack.c.l.b16 %v303
        %v401 = vunpack.c.h.b16 %v303
        %v402 = vunpack.c.l.b16 %v304
        %v403 = vunpack.c.h.b16 %v304
        %v404 = vunpack.c.l.b16 %v305
        %v405 = vunpack.c.h.b16 %v305
        %v406 = vunpack.c.l.b16 %v306
        %v407 = vunpack.c.h.b16 %v306
        %v408 = vunpack.c.l.b16 %v307
        %v409 = vunpack.c.h.b16 %v307
        %v410 = vunpack.c.l.b16 %v308
        %v411 = vunpack.c.h.b16 %v308
        %v412 = vunpack.c.l.b16 %v309
        %v413 = vunpack.c.h.b16 %v309
        %v414 = vunpack.c.l.b16 %v310
        %v415 = vunpack.c.h.b16 %v310
        %v416 = vunpack.c.l.b16 %v311
        %v417 = vunpack.c.h.b16 %v311
        %v418 = vunpack.c.l.b16 %v312
        %v419 = vunpack.c.h.b16 %v312
        %v420 = vunpack.c.l.b16 %v313
        %v421 = vunpack.c.h.b16 %v313
        %v422 = vunpack.c.l.b16 %v314
        %v423 = vunpack.c.h.b16 %v314
        %v424 = vunpack.c.l.b16 %v315
        %v425 = vunpack.c.h.b16 %v315
        %v426 = vunpack.c.l.b16 %v316
        %v427 = vunpack.c.h.b16 %v316
        %v428 = vunpack.c.l.b16 %v317
        %v429 = vunpack.c.h.b16 %v317
        %v430 = vunpack.c.l.b16 %v318
        %v431 = vunpack.c.h.b16 %v318
        %v432 = vunpack.c.l.b16 %v319
        %v433 = vunpack.c.h.b16 %v319
        %v434 = vunpack.c.l.b16 %v320
        %v435 = vunpack.c.h.b16 %v320
        %v436 = vunpack.c.l.b16 %v321
        %v437 = vunpack.c.h.b16 %v321
        %v438 = vunpack.c.l.b16 %v322
        %v439 = vunpack.c.h.b16 %v322
        %v440 = vunpack.c.l.b16 %v323
        %v441 = vunpack.c.h.b16 %v323
        %v442 = vunpack.c.l.b16 %v324
        %v443 = vunpack.c.h.b16 %v324
        %v444 = vunpack.c.l.b16 %v325
        %v445 = vunpack.c.h.b16 %v325
        %v446 = vunpack.c.l.b16 %v326
        %v447 = vunpack.c.h.b16 %v326
        %v448 = vunpack.c.l.b16 %v327
        %v449 = vunpack.c.h.b16 %v327
        %v450 = vunpack.c.l.b16 %v328
        %v451 = vunpack.c.h.b16 %v328
        %v452 = vunpack.c.l.b16 %v329
        %v453 = vunpack.c.h.b16 %v329
        %v454 = vunpack.c.l.b16 %v330
        %v455 = vunpack.c.h.b16 %v330
        %v456 = vunpack.c.l.b16 %v331
        %v457 = vunpack.c.h.b16 %v331
        %v458 = vunpack.c.l.b16 %v332
        %v459 = vunpack.c.h.b16 %v332
        %v460 = vunpack.c.l.b16 %v333
        %v461 = vunpack.c.h.b16 %v333
        %v462 = vpack.c.b16 %v400, %v398
        %v463 = vpack.c.b16 %v401, %v399
        %v464 = vpack.c.b16 %v404, %v402
        %v465 = vpack.c.b16 %v405, %v403
        %v466 = vpack.c.b16 %v408, %v406
        %v467 = vpack.c.b16 %v409, %v407
        %v468 = vpack.c.b16 %v412, %v410
        %v469 = vpack.c.b16 %v413, %v411
        %v470 = vpack.c.b16 %v416, %v414
        %v471 = vpack.c.b16 %v417, %v415
        %v472 = vpack.c.b16 %v420, %v418
        %v473 = vpack.c.b16 %v421, %v419
        %v474 = vpack.c.b16 %v424, %v422
        %v475 = vpack.c.b16 %v425, %v423
        %v476 = vpack.c.b16 %v428, %v426
        %v477 = vpack.c.b16 %v429, %v427
        %v478 = vpack.c.b16 %v432, %v430
        %v479 = vpack.c.b16 %v433, %v431
        %v480 = vpack.c.b16 %v436, %v434
        %v481 = vpack.c.b16 %v437, %v435
        %v482 = vpack.c.b16 %v440, %v438
        %v483 = vpack.c.b16 %v441, %v439
        %v484 = vpack.c.b16 %v444, %v442
        %v485 = vpack.c.b16 %v445, %v443
        %v486 = vpack.c.b16 %v448, %v446
        %v487 = vpack.c.b16 %v449, %v447
        %v488 = vpack.c.b16 %v452, %v450
        %v489 = vpack.c.b16 %v453, %v451
        %v490 = vpack.c.b16 %v456, %v454
        %v491 = vpack.c.b16 %v457, %v455
        %v492 = vpack.c.b16 %v460, %v458
        %v493 = vpack.c.b16 %v461, %v459
        %v558 = vunpack.c.l.b16 %v334
        %v559 = vunpack.c.l.b16 %v335
        %v560 = vunpack.c.l.b16 %v336
        %v561 = vunpack.c.l.b16 %v337
        %v562 = vunpack.c.l.b16 %v338
        %v563 = vunpack.c.l.b16 %v339
        %v564 = vunpack.c.l.b16 %v340
        %v565 = vunpack.c.l.b16 %v341
        %v566 = vunpack.c.l.b16 %v342
        %v567 = vunpack.c.l.b16 %v343
        %v568 = vunpack.c.l.b16 %v344
        %v569 = vunpack.c.l.b16 %v345
        %v570 = vunpack.c.l.b16 %v346
        %v571 = vunpack.c.l.b16 %v347
        %v572 = vunpack.c.l.b16 %v348
        %v573 = vunpack.c.l.b16 %v349
        %v574 = vunpack.c.l.b16 %v350
        %v575 = vunpack.c.l.b16 %v351
        %v576 = vunpack.c.l.b16 %v352
        %v577 = vunpack.c.l.b16 %v353
        %v578 = vunpack.c.l.b16 %v354
        %v579 = vunpack.c.l.b16 %v355
        %v580 = vunpack.c.l.b16 %v356
        %v581 = vunpack.c.l.b16 %v357
        %v582 = vunpack.c.l.b16 %v358
        %v583 = vunpack.c.l.b16 %v359
        %v584 = vunpack.c.l.b16 %v360
        %v585 = vunpack.c.l.b16 %v361
        %v586 = vunpack.c.l.b16 %v362
        %v587 = vunpack.c.l.b16 %v363
        %v588 = vunpack.c.l.b16 %v364
        %v589 = vunpack.c.l.b16 %v365
        %v590 = vpack.c.b16 %v559, %v558
        %v591 = vpack.c.b16 %v561, %v560
        %v592 = vpack.c.b16 %v563, %v562
        %v593 = vpack.c.b16 %v565, %v564
        %v594 = vpack.c.b16 %v567, %v566
        %v595 = vpack.c.b16 %v569, %v568
        %v596 = vpack.c.b16 %v571, %v570
        %v597 = vpack.c.b16 %v573, %v572
        %v598 = vpack.c.b16 %v575, %v574
        %v599 = vpack.c.b16 %v577, %v576
        %v600 = vpack.c.b16 %v579, %v578
        %v601 = vpack.c.b16 %v581, %v580
        %v602 = vpack.c.b16 %v583, %v582
        %v603 = vpack.c.b16 %v585, %v584
        %v604 = vpack.c.b16 %v587, %v586
        %v605 = vpack.c.b16 %v589, %v588
        %622 = vmatprep.subr.bf16.mxu0 0
        %623 = vmatpush1.bf16.msra.mxu0 %v590
        %624 = vmatprep.subr.bf16.mxu0 0
        %625 = vmatpush1.bf16.msra.mxu0 %v591
        %626 = vmatprep.subr.bf16.mxu0 0
        %627 = vmatpush1.bf16.msra.mxu0 %v592
        %628 = vmatprep.subr.bf16.mxu0 0
        %629 = vmatpush1.bf16.msra.mxu0 %v593
        %630 = vmatprep.subr.bf16.mxu0 0
        %631 = vmatpush1.bf16.msra.mxu0 %v594
        %632 = vmatprep.subr.bf16.mxu0 0
        %633 = vmatpush1.bf16.msra.mxu0 %v595
        %634 = vmatprep.subr.bf16.mxu0 0
        %635 = vmatpush1.bf16.msra.mxu0 %v596
        %636 = vmatprep.subr.bf16.mxu0 0
        %637 = vmatpush1.bf16.msra.mxu0 %v597
        %638 = vmatprep.subr.bf16.mxu0 0
        %639 = vmatpush1.bf16.msra.mxu0 %v598
        %640 = vmatprep.subr.bf16.mxu0 0
        %641 = vmatpush1.bf16.msra.mxu0 %v599
        %642 = vmatprep.subr.bf16.mxu0 0
        %643 = vmatpush1.bf16.msra.mxu0 %v600
        %644 = vmatprep.subr.bf16.mxu0 0
        %645 = vmatpush1.bf16.msra.mxu0 %v601
        %646 = vmatprep.subr.bf16.mxu0 0
        %647 = vmatpush1.bf16.msra.mxu0 %v602
        %648 = vmatprep.subr.bf16.mxu0 0
        %649 = vmatpush1.bf16.msra.mxu0 %v603
        %650 = vmatprep.subr.bf16.mxu0 0
        %651 = vmatpush1.bf16.msra.mxu0 %v604
        %652 = vmatprep.subr.bf16.mxu0 0
        %653 = vmatpush1.bf16.msra.mxu0 %v605
        %654 = vmatprep.mubr.bf16.mxu0 %v463
        %655 = vmatmul.mubr.bf16.gmra.mrb[0].mxu0 %v462
        %v656 = vpop.f32.mrb[0].mxu0
        %v657 = vadd.f32 0.0, %v656
        %v658 = vpop.f32.mrb[0].mxu0
        %v659 = vpop.f32.mrb[0].mxu0
        %v660 = vadd.f32 0.0, %v659
        %v661 = vpop.f32.mrb[0].mxu0
        %662 = vmatprep.mubr.bf16.mxu0 %v465
        %663 = vmatmul.mubr.bf16.gmra.mrb[0].mxu0 %v464
        %v664 = vpop.f32.mrb[0].mxu0
        %v665 = vadd.f32 0.0, %v664
        %v666 = vpop.f32.mrb[0].mxu0
        %v667 = vpop.f32.mrb[0].mxu0
        %v668 = vadd.f32 0.0, %v667
        %v669 = vpop.f32.mrb[0].mxu0
        %670 = vmatprep.mubr.bf16.mxu0 %v467
        %671 = vmatmul.mubr.bf16.gmra.mrb[0].mxu0 %v466
        %v672 = vpop.f32.mrb[0].mxu0
        %v673 = vadd.f32 0.0, %v672
        %v674 = vpop.f32.mrb[0].mxu0
        %v675 = vpop.f32.mrb[0].mxu0
        %v676 = vadd.f32 0.0, %v675
        %v677 = vpop.f32.mrb[0].mxu0
        %678 = vmatprep.mubr.bf16.mxu0 %v469
        %679 = vmatmul.mubr.bf16.gmra.mrb[0].mxu0 %v468
        %v680 = vpop.f32.mrb[0].mxu0
        %v681 = vadd.f32 0.0, %v680
        %v682 = vpop.f32.mrb[0].mxu0
        %v683 = vpop.f32.mrb[0].mxu0
        %v684 = vadd.f32 0.0, %v683
        %v685 = vpop.f32.mrb[0].mxu0
        %686 = vmatprep.mubr.bf16.mxu0 %v471
        %687 = vmatmul.mubr.bf16.gmra.mrb[0].mxu0 %v470
        %v688 = vpop.f32.mrb[0].mxu0
        %v689 = vadd.f32 0.0, %v688
        %v690 = vpop.f32.mrb[0].mxu0
        %v691 = vpop.f32.mrb[0].mxu0
        %v692 = vadd.f32 0.0, %v691
        %v693 = vpop.f32.mrb[0].mxu0
        %694 = vmatprep.mubr.bf16.mxu0 %v473
        %695 = vmatmul.mubr.bf16.gmra.mrb[0].mxu0 %v472
        %v696 = vpop.f32.mrb[0].mxu0
        %v697 = vadd.f32 0.0, %v696
        %v698 = vpop.f32.mrb[0].mxu0
        %v699 = vpop.f32.mrb[0].mxu0
        %v700 = vadd.f32 0.0, %v699
        %v701 = vpop.f32.mrb[0].mxu0
        %702 = vmatprep.mubr.bf16.mxu0 %v475
        %703 = vmatmul.mubr.bf16.gmra.mrb[0].mxu0 %v474
        %v704 = vpop.f32.mrb[0].mxu0
        %v705 = vadd.f32 0.0, %v704
        %v706 = vpop.f32.mrb[0].mxu0
        %v707 = vpop.f32.mrb[0].mxu0
        %v708 = vadd.f32 0.0, %v707
        %v709 = vpop.f32.mrb[0].mxu0
        %710 = vmatprep.mubr.bf16.mxu0 %v477
        %711 = vmatmul.mubr.bf16.gmra.mrb[0].mxu0 %v476
        %v712 = vpop.f32.mrb[0].mxu0
        %v713 = vadd.f32 0.0, %v712
        %v714 = vpop.f32.mrb[0].mxu0
        %v715 = vpop.f32.mrb[0].mxu0
        %v716 = vadd.f32 0.0, %v715
        %v717 = vpop.f32.mrb[0].mxu0
        %718 = vmatprep.mubr.bf16.mxu0 %v479
        %719 = vmatmul.mubr.bf16.gmra.mrb[0].mxu0 %v478
        %v720 = vpop.f32.mrb[0].mxu0
        %v721 = vadd.f32 0.0, %v720
        %v722 = vpop.f32.mrb[0].mxu0
        %v723 = vpop.f32.mrb[0].mxu0
        %v724 = vadd.f32 0.0, %v723
        %v725 = vpop.f32.mrb[0].mxu0
        %726 = vmatprep.mubr.bf16.mxu0 %v481
        %727 = vmatmul.mubr.bf16.gmra.mrb[0].mxu0 %v480
        %v728 = vpop.f32.mrb[0].mxu0
        %v729 = vadd.f32 0.0, %v728
        %v730 = vpop.f32.mrb[0].mxu0
        %v731 = vpop.f32.mrb[0].mxu0
        %v732 = vadd.f32 0.0, %v731
        %v733 = vpop.f32.mrb[0].mxu0
        %734 = vmatprep.mubr.bf16.mxu0 %v483
        %735 = vmatmul.mubr.bf16.gmra.mrb[0].mxu0 %v482
        %v736 = vpop.f32.mrb[0].mxu0
        %v737 = vadd.f32 0.0, %v736
        %v738 = vpop.f32.mrb[0].mxu0
        %v739 = vpop.f32.mrb[0].mxu0
        %v740 = vadd.f32 0.0, %v739
        %v741 = vpop.f32.mrb[0].mxu0
        %742 = vmatprep.mubr.bf16.mxu0 %v485
        %743 = vmatmul.mubr.bf16.gmra.mrb[0].mxu0 %v484
        %v744 = vpop.f32.mrb[0].mxu0
        %v745 = vadd.f32 0.0, %v744
        %v746 = vpop.f32.mrb[0].mxu0
        %v747 = vpop.f32.mrb[0].mxu0
        %v748 = vadd.f32 0.0, %v747
        %v749 = vpop.f32.mrb[0].mxu0
        %750 = vmatprep.mubr.bf16.mxu0 %v487
        %751 = vmatmul.mubr.bf16.gmra.mrb[0].mxu0 %v486
        %v752 = vpop.f32.mrb[0].mxu0
        %v753 = vadd.f32 0.0, %v752
        %v754 = vpop.f32.mrb[0].mxu0
        %v755 = vpop.f32.mrb[0].mxu0
        %v756 = vadd.f32 0.0, %v755
        %v757 = vpop.f32.mrb[0].mxu0
        %758 = vmatprep.mubr.bf16.mxu0 %v489
        %759 = vmatmul.mubr.bf16.gmra.mrb[0].mxu0 %v488
        %v760 = vpop.f32.mrb[0].mxu0
        %v761 = vadd.f32 0.0, %v760
        %v762 = vpop.f32.mrb[0].mxu0
        %v763 = vpop.f32.mrb[0].mxu0
        %v764 = vadd.f32 0.0, %v763
        %v765 = vpop.f32.mrb[0].mxu0
        %766 = vmatprep.mubr.bf16.mxu0 %v491
        %767 = vmatmul.mubr.bf16.gmra.mrb[0].mxu0 %v490
        %v768 = vpop.f32.mrb[0].mxu0
        %v769 = vadd.f32 0.0, %v768
        %v770 = vpop.f32.mrb[0].mxu0
        %v771 = vpop.f32.mrb[0].mxu0
        %v772 = vadd.f32 0.0, %v771
        %v773 = vpop.f32.mrb[0].mxu0
        %774 = vmatprep.mubr.bf16.mxu0 %v493
        %775 = vmatmul.mubr.bf16.gmra.mrb[0].mxu0 %v492
        %v776 = vpop.f32.mrb[0].mxu0
        %v777 = vadd.f32 0.0, %v776
        %v778 = vpop.f32.mrb[0].mxu0
        %v779 = vpop.f32.mrb[0].mxu0
        %v780 = vadd.f32 0.0, %v779
        %v781 = vpop.f32.mrb[0].mxu0
        %782 = vdwg.mxu0
        %v783 = vadd.f32 %v270, %v657
        %v784 = vadd.f32 %v271, %v660
        %v785 = vadd.f32 %v272, %v665
        %v786 = vadd.f32 %v273, %v668
        %v787 = vadd.f32 %v274, %v673
        %v788 = vadd.f32 %v275, %v676
        %v789 = vadd.f32 %v276, %v681
        %v790 = vadd.f32 %v277, %v684
        %v791 = vadd.f32 %v278, %v689
        %v792 = vadd.f32 %v279, %v692
        %v793 = vadd.f32 %v280, %v697
        %v794 = vadd.f32 %v281, %v700
        %v795 = vadd.f32 %v282, %v705
        %v796 = vadd.f32 %v283, %v708
        %v797 = vadd.f32 %v284, %v713
        %v798 = vadd.f32 %v285, %v716
        %v799 = vadd.f32 %v286, %v721
        %v800 = vadd.f32 %v287, %v724
        %v801 = vadd.f32 %v288, %v729
        %v802 = vadd.f32 %v289, %v732
        %v803 = vadd.f32 %v290, %v737
        %v804 = vadd.f32 %v291, %v740
        %v805 = vadd.f32 %v292, %v745
        %v806 = vadd.f32 %v293, %v748
        %v807 = vadd.f32 %v294, %v753
        %v808 = vadd.f32 %v295, %v756
        %v809 = vadd.f32 %v296, %v761
        %v810 = vadd.f32 %v297, %v764
        %v811 = vadd.f32 %v298, %v769
        %v812 = vadd.f32 %v299, %v772
        %v813 = vadd.f32 %v300, %v777
        %v814 = vadd.f32 %v301, %v780
        %815 = vst [vmem:[#allocation2] sm:$0xff] %v783
        %816 = vst [vmem:[#allocation2 + $0x8] sm:$0xff] %v784
        %817 = vst [vmem:[#allocation2 + $0x10] sm:$0xff] %v785
        %818 = vst [vmem:[#allocation2 + $0x18] sm:$0xff] %v786
        %819 = vst [vmem:[#allocation2 + $0x20] sm:$0xff] %v787
        %820 = vst [vmem:[#allocation2 + $0x28] sm:$0xff] %v788
        %821 = vst [vmem:[#allocation2 + $0x30] sm:$0xff] %v789
        %822 = vst [vmem:[#allocation2 + $0x38] sm:$0xff] %v790
        %823 = vst [vmem:[#allocation2 + $0x40] sm:$0xff] %v791
        %824 = vst [vmem:[#allocation2 + $0x48] sm:$0xff] %v792
        %825 = vst [vmem:[#allocation2 + $0x50] sm:$0xff] %v793
        %826 = vst [vmem:[#allocation2 + $0x58] sm:$0xff] %v794
        %827 = vst [vmem:[#allocation2 + $0x60] sm:$0xff] %v795
        %828 = vst [vmem:[#allocation2 + $0x68] sm:$0xff] %v796
        %829 = vst [vmem:[#allocation2 + $0x70] sm:$0xff] %v797
        %830 = vst [vmem:[#allocation2 + $0x78] sm:$0xff] %v798
        %831 = vst [vmem:[#allocation2 + $0x80] sm:$0xff] %v799
        %832 = vst [vmem:[#allocation2 + $0x88] sm:$0xff] %v800
        %833 = vst [vmem:[#allocation2 + $0x90] sm:$0xff] %v801
        %834 = vst [vmem:[#allocation2 + $0x98] sm:$0xff] %v802
        %835 = vst [vmem:[#allocation2 + $0xa0] sm:$0xff] %v803
        %836 = vst [vmem:[#allocation2 + $0xa8] sm:$0xff] %v804
        %837 = vst [vmem:[#allocation2 + $0xb0] sm:$0xff] %v805
        %838 = vst [vmem:[#allocation2 + $0xb8] sm:$0xff] %v806
        %839 = vst [vmem:[#allocation2 + $0xc0] sm:$0xff] %v807
        %840 = vst [vmem:[#allocation2 + $0xc8] sm:$0xff] %v808
        %841 = vst [vmem:[#allocation2 + $0xd0] sm:$0xff] %v809
        %842 = vst [vmem:[#allocation2 + $0xd8] sm:$0xff] %v810
        %843 = vst [vmem:[#allocation2 + $0xe0] sm:$0xff] %v811
        %844 = vst [vmem:[#allocation2 + $0xe8] sm:$0xff] %v812
        %845 = vst [vmem:[#allocation2 + $0xf0] sm:$0xff] %v813
        %846 = vst [vmem:[#allocation2 + $0xf8] sm:$0xff] %v814
        // Predicated region
        $region45: #{tpu_custom_call.1} parent=31 // pred_check
          %p847 = pneg %p234
        $region46: #{tpu_custom_call.1} parent=31 // pred_check_branch
          %849 = sbr.rel (%p847) target = $region48
        $region47: #{tpu_custom_call.1} parent=31 // pred_region
          %v850 = vld [vmem:[#allocation2] sm:$0xff]
          %v851 = vld [vmem:[#allocation2 + $0x8] sm:$0xff]
          %v852 = vld [vmem:[#allocation2 + $0x10] sm:$0xff]
          %v853 = vld [vmem:[#allocation2 + $0x18] sm:$0xff]
          %v854 = vld [vmem:[#allocation2 + $0x20] sm:$0xff]
          %v855 = vld [vmem:[#allocation2 + $0x28] sm:$0xff]
          %v856 = vld [vmem:[#allocation2 + $0x30] sm:$0xff]
          %v857 = vld [vmem:[#allocation2 + $0x38] sm:$0xff]
          %v858 = vld [vmem:[#allocation2 + $0x40] sm:$0xff]
          %v859 = vld [vmem:[#allocation2 + $0x48] sm:$0xff]
          %v860 = vld [vmem:[#allocation2 + $0x50] sm:$0xff]
          %v861 = vld [vmem:[#allocation2 + $0x58] sm:$0xff]
          %v862 = vld [vmem:[#allocation2 + $0x60] sm:$0xff]
          %v863 = vld [vmem:[#allocation2 + $0x68] sm:$0xff]
          %v864 = vld [vmem:[#allocation2 + $0x70] sm:$0xff]
          %v865 = vld [vmem:[#allocation2 + $0x78] sm:$0xff]
          %v866 = vld [vmem:[#allocation2 + $0x80] sm:$0xff]
          %v867 = vld [vmem:[#allocation2 + $0x88] sm:$0xff]
          %v868 = vld [vmem:[#allocation2 + $0x90] sm:$0xff]
          %v869 = vld [vmem:[#allocation2 + $0x98] sm:$0xff]
          %v870 = vld [vmem:[#allocation2 + $0xa0] sm:$0xff]
          %v871 = vld [vmem:[#allocation2 + $0xa8] sm:$0xff]
          %v872 = vld [vmem:[#allocation2 + $0xb0] sm:$0xff]
          %v873 = vld [vmem:[#allocation2 + $0xb8] sm:$0xff]
          %v874 = vld [vmem:[#allocation2 + $0xc0] sm:$0xff]
          %v875 = vld [vmem:[#allocation2 + $0xc8] sm:$0xff]
          %v876 = vld [vmem:[#allocation2 + $0xd0] sm:$0xff]
          %v877 = vld [vmem:[#allocation2 + $0xd8] sm:$0xff]
          %v878 = vld [vmem:[#allocation2 + $0xe0] sm:$0xff]
          %v879 = vld [vmem:[#allocation2 + $0xe8] sm:$0xff]
          %v880 = vld [vmem:[#allocation2 + $0xf0] sm:$0xff]
          %v881 = vld [vmem:[#allocation2 + $0xf8] sm:$0xff]
          %v882 = vld [vmem:[%s2] sm:$0x1]
          %v884 = vlaneseq
          %v885 = vshrl.u32 %v884, 7
          %v886 = vsub.s32 0, %v885
          %v887 = vrot.slane %v882, %v886
          %v889 = vadd.f32 %v850, %v887
          %v890 = vadd.f32 %v851, %v887
          %v891 = vadd.f32 %v852, %v887
          %v892 = vadd.f32 %v853, %v887
          %v893 = vadd.f32 %v854, %v887
          %v894 = vadd.f32 %v855, %v887
          %v895 = vadd.f32 %v856, %v887
          %v896 = vadd.f32 %v857, %v887
          %v897 = vadd.f32 %v858, %v887
          %v898 = vadd.f32 %v859, %v887
          %v899 = vadd.f32 %v860, %v887
          %v900 = vadd.f32 %v861, %v887
          %v901 = vadd.f32 %v862, %v887
          %v902 = vadd.f32 %v863, %v887
          %v903 = vadd.f32 %v864, %v887
          %v904 = vadd.f32 %v865, %v887
          %v905 = vadd.f32 %v866, %v887
          %v906 = vadd.f32 %v867, %v887
          %v907 = vadd.f32 %v868, %v887
          %v908 = vadd.f32 %v869, %v887
          %v909 = vadd.f32 %v870, %v887
          %v910 = vadd.f32 %v871, %v887
          %v911 = vadd.f32 %v872, %v887
          %v912 = vadd.f32 %v873, %v887
          %v913 = vadd.f32 %v874, %v887
          %v914 = vadd.f32 %v875, %v887
          %v915 = vadd.f32 %v876, %v887
          %v916 = vadd.f32 %v877, %v887
          %v917 = vadd.f32 %v878, %v887
          %v918 = vadd.f32 %v879, %v887
          %v919 = vadd.f32 %v880, %v887
          %v920 = vadd.f32 %v881, %v887
          %v921 = vmax.f32 %v889, 0.0
          %v922 = vmax.f32 %v890, 0.0
          %v923 = vmax.f32 %v891, 0.0
          %v924 = vmax.f32 %v892, 0.0
          %v925 = vmax.f32 %v893, 0.0
          %v926 = vmax.f32 %v894, 0.0
          %v927 = vmax.f32 %v895, 0.0
          %v928 = vmax.f32 %v896, 0.0
          %v929 = vmax.f32 %v897, 0.0
          %v930 = vmax.f32 %v898, 0.0
          %v931 = vmax.f32 %v899, 0.0
          %v932 = vmax.f32 %v900, 0.0
          %v933 = vmax.f32 %v901, 0.0
          %v934 = vmax.f32 %v902, 0.0
          %v935 = vmax.f32 %v903, 0.0
          %v936 = vmax.f32 %v904, 0.0
          %v937 = vmax.f32 %v905, 0.0
          %v938 = vmax.f32 %v906, 0.0
          %v939 = vmax.f32 %v907, 0.0
          %v940 = vmax.f32 %v908, 0.0
          %v941 = vmax.f32 %v909, 0.0
          %v942 = vmax.f32 %v910, 0.0
          %v943 = vmax.f32 %v911, 0.0
          %v944 = vmax.f32 %v912, 0.0
          %v945 = vmax.f32 %v913, 0.0
          %v946 = vmax.f32 %v914, 0.0
          %v947 = vmax.f32 %v915, 0.0
          %v948 = vmax.f32 %v916, 0.0
          %v949 = vmax.f32 %v917, 0.0
          %v950 = vmax.f32 %v918, 0.0
          %v951 = vmax.f32 %v919, 0.0
          %v952 = vmax.f32 %v920, 0.0
          %v953 = vpack.c.bf16 %v922, %v921
          %v954 = vpack.c.bf16 %v924, %v923
          %v955 = vpack.c.bf16 %v926, %v925
          %v956 = vpack.c.bf16 %v928, %v927
          %v957 = vpack.c.bf16 %v930, %v929
          %v958 = vpack.c.bf16 %v932, %v931
          %v959 = vpack.c.bf16 %v934, %v933
          %v960 = vpack.c.bf16 %v936, %v935
          %v961 = vpack.c.bf16 %v938, %v937
          %v962 = vpack.c.bf16 %v940, %v939
          %v963 = vpack.c.bf16 %v942, %v941
          %v964 = vpack.c.bf16 %v944, %v943
          %v965 = vpack.c.bf16 %v946, %v945
          %v966 = vpack.c.bf16 %v948, %v947
          %v967 = vpack.c.bf16 %v950, %v949
          %v968 = vpack.c.bf16 %v952, %v951
          %v985 = vunpack.c.l.b16 %v953
          %v986 = vunpack.c.h.b16 %v953
          %v987 = vunpack.c.l.b16 %v954
          %v988 = vunpack.c.h.b16 %v954
          %v989 = vunpack.c.l.b16 %v955
          %v990 = vunpack.c.h.b16 %v955
          %v991 = vunpack.c.l.b16 %v956
          %v992 = vunpack.c.h.b16 %v956
          %v993 = vunpack.c.l.b16 %v957
          %v994 = vunpack.c.h.b16 %v957
          %v995 = vunpack.c.l.b16 %v958
          %v996 = vunpack.c.h.b16 %v958
          %v997 = vunpack.c.l.b16 %v959
          %v998 = vunpack.c.h.b16 %v959
          %v999 = vunpack.c.l.b16 %v960
          %v1000 = vunpack.c.h.b16 %v960
          %v1001 = vunpack.c.l.b16 %v961
          %v1002 = vunpack.c.h.b16 %v961
          %v1003 = vunpack.c.l.b16 %v962
          %v1004 = vunpack.c.h.b16 %v962
          %v1005 = vunpack.c.l.b16 %v963
          %v1006 = vunpack.c.h.b16 %v963
          %v1007 = vunpack.c.l.b16 %v964
          %v1008 = vunpack.c.h.b16 %v964
          %v1009 = vunpack.c.l.b16 %v965
          %v1010 = vunpack.c.h.b16 %v965
          %v1011 = vunpack.c.l.b16 %v966
          %v1012 = vunpack.c.h.b16 %v966
          %v1013 = vunpack.c.l.b16 %v967
          %v1014 = vunpack.c.h.b16 %v967
          %v1015 = vunpack.c.l.b16 %v968
          %v1016 = vunpack.c.h.b16 %v968
          %v1017 = vpack.c.b16 %v985, %v985
          %v1018 = vpack.c.b16 %v986, %v986
          %v1019 = vpack.c.b16 %v987, %v987
          %v1020 = vpack.c.b16 %v988, %v988
          %v1021 = vpack.c.b16 %v989, %v989
          %v1022 = vpack.c.b16 %v990, %v990
          %v1023 = vpack.c.b16 %v991, %v991
          %v1024 = vpack.c.b16 %v992, %v992
          %v1025 = vpack.c.b16 %v993, %v993
          %v1026 = vpack.c.b16 %v994, %v994
          %v1027 = vpack.c.b16 %v995, %v995
          %v1028 = vpack.c.b16 %v996, %v996
          %v1029 = vpack.c.b16 %v997, %v997
          %v1030 = vpack.c.b16 %v998, %v998
          %v1031 = vpack.c.b16 %v999, %v999
          %v1032 = vpack.c.b16 %v1000, %v1000
          %v1033 = vpack.c.b16 %v1001, %v1001
          %v1034 = vpack.c.b16 %v1002, %v1002
          %v1035 = vpack.c.b16 %v1003, %v1003
          %v1036 = vpack.c.b16 %v1004, %v1004
          %v1037 = vpack.c.b16 %v1005, %v1005
          %v1038 = vpack.c.b16 %v1006, %v1006
          %v1039 = vpack.c.b16 %v1007, %v1007
          %v1040 = vpack.c.b16 %v1008, %v1008
          %v1041 = vpack.c.b16 %v1009, %v1009
          %v1042 = vpack.c.b16 %v1010, %v1010
          %v1043 = vpack.c.b16 %v1011, %v1011
          %v1044 = vpack.c.b16 %v1012, %v1012
          %v1045 = vpack.c.b16 %v1013, %v1013
          %v1046 = vpack.c.b16 %v1014, %v1014
          %v1047 = vpack.c.b16 %v1015, %v1015
          %v1048 = vpack.c.b16 %v1016, %v1016
          %1081 = vst [vmem:[%s228] sm:$0xf] %v1017
          %1082 = vst [vmem:[%s228 + $0x4] sm:$0xf] %v1018
          %1083 = vst [vmem:[%s228 + $0x8] sm:$0xf] %v1019
          %1084 = vst [vmem:[%s228 + $0xc] sm:$0xf] %v1020
          %1085 = vst [vmem:[%s228 + $0x10] sm:$0xf] %v1021
          %1086 = vst [vmem:[%s228 + $0x14] sm:$0xf] %v1022
          %1087 = vst [vmem:[%s228 + $0x18] sm:$0xf] %v1023
          %1088 = vst [vmem:[%s228 + $0x1c] sm:$0xf] %v1024
          %1089 = vst [vmem:[%s228 + $0x20] sm:$0xf] %v1025
          %1090 = vst [vmem:[%s228 + $0x24] sm:$0xf] %v1026
          %1091 = vst [vmem:[%s228 + $0x28] sm:$0xf] %v1027
          %1092 = vst [vmem:[%s228 + $0x2c] sm:$0xf] %v1028
          %1093 = vst [vmem:[%s228 + $0x30] sm:$0xf] %v1029
          %1094 = vst [vmem:[%s228 + $0x34] sm:$0xf] %v1030
          %1095 = vst [vmem:[%s228 + $0x38] sm:$0xf] %v1031
          %1096 = vst [vmem:[%s228 + $0x3c] sm:$0xf] %v1032
          %1097 = vst [vmem:[%s228 + $0x40] sm:$0xf] %v1033
          %1098 = vst [vmem:[%s228 + $0x44] sm:$0xf] %v1034
          %1099 = vst [vmem:[%s228 + $0x48] sm:$0xf] %v1035
          %1100 = vst [vmem:[%s228 + $0x4c] sm:$0xf] %v1036
          %1101 = vst [vmem:[%s228 + $0x50] sm:$0xf] %v1037
          %1102 = vst [vmem:[%s228 + $0x54] sm:$0xf] %v1038
          %1103 = vst [vmem:[%s228 + $0x58] sm:$0xf] %v1039
          %1104 = vst [vmem:[%s228 + $0x5c] sm:$0xf] %v1040
          %1105 = vst [vmem:[%s228 + $0x60] sm:$0xf] %v1041
          %1106 = vst [vmem:[%s228 + $0x64] sm:$0xf] %v1042
          %1107 = vst [vmem:[%s228 + $0x68] sm:$0xf] %v1043
          %1108 = vst [vmem:[%s228 + $0x6c] sm:$0xf] %v1044
          %1109 = vst [vmem:[%s228 + $0x70] sm:$0xf] %v1045
          %1110 = vst [vmem:[%s228 + $0x74] sm:$0xf] %v1046
          %1111 = vst [vmem:[%s228 + $0x78] sm:$0xf] %v1047
          %1112 = vst [vmem:[%s228 + $0x7c] sm:$0xf] %v1048
        $region48: #{tpu_custom_call.1} parent=31 // pred_fallthru
          _
        %s1113 = sand.u32 %s116, 1
        %s1114 = scalar_lea.sflag [#allocation5], %s1113
        %s1115 = sand.u32 %s116, 1
        %s1116 = smul.addr %s1115, 128
        %s1117 = scalar_lea.vmem [#allocation8], %s1116
        // Predicated region
        $region49: #{tpu_custom_call.1} parent=31 // pred_check
          %p1118 = pneg %p126
        $region50: #{tpu_custom_call.1} parent=31 // pred_check_branch
          %1120 = sbr.rel (%p1118) target = $region52
        $region51: #{tpu_custom_call.1} parent=31 // pred_region
          %s1121 = smul.u32 32, %s25
          %s1123 = ssub.s32 2048, 2048
          %1124 = vsyncadd %s1114, %s1123
          %s1125 = smul.addr %s1121, 64
          %s1126 = scalar_lea.hbm %s3, %s1125
          %s1127 = sshll.u32 %s1117, 4
          %s1128 = int_to_ptr.vmem [resolvable:$true] %s1127
          %1133 = dma.vmem_to_hbm [thread:$0]  %s1128, 2048, %s1126, %s1114, 64, 64, 4
        $region52: #{tpu_custom_call.1} parent=31 // pred_fallthru
          _
      $region32: #{tpu_custom_call.1} parent=5 // pred_fallthru
        _
      %p1134 = scmp.le.s32.totalorder 2, %s16
      // Predicated region
      $region53: #{tpu_custom_call.1} parent=5 // pred_check
        %p1135 = pneg %p1134
      $region54: #{tpu_custom_call.1} parent=5 // pred_check_branch
        %1137 = sbr.rel (%p1135) target = $region56
      $region55: #{tpu_custom_call.1} parent=5 // pred_region
        %s1138 = ssub.s32 %s16, 2
        // Predicated region
        $region57: #{tpu_custom_call.1} parent=55 // pred_check
          %p1139 = pneg %p132
        $region58: #{tpu_custom_call.1} parent=55 // pred_check_branch
          %1141 = sbr.rel (%p1139) target = $region60
        $region59: #{tpu_custom_call.1} parent=55 // pred_region
          %s1142 = sand.u32 %s117, 1
          %s1143 = scalar_lea.sflag [#allocation5], %s1142
          %s1144 = sand.u32 %s117, 1
          %s1145 = smul.addr %s1144, 128
          %s1146 = scalar_lea.vmem [#allocation8], %s1145
          %1147 = dma.done %s1143, 2048
        $region60: #{tpu_custom_call.1} parent=55 // pred_fallthru
          _
      $region56: #{tpu_custom_call.1} parent=5 // pred_fallthru
        _
    $region6: #{tpu_custom_call.1} parent=1 // loop_footer
      %s20 = sadd.s32 1, %s16
    $region7: #{tpu_custom_call.1} parent=1 // loop_footer_branch
      %15 = sbr.rel target = $region3
    $region8: #{tpu_custom_call.1} parent=1 // loop_exit
      _
    %1148 = vsyncpa [#allocation4], 1
    %s1149 = scalar_lea.sflag [#allocation4], 1
    %1150 = vsyncpa %s1149, 1
    %1151 = vsyncpa [#allocation7], 1
    %1152 = vsyncpa [#allocation5], 1
    %s1153 = scalar_lea.sflag [#allocation5], 1
    %1154 = vsyncpa %s1153, 1

</llo_original>
